<compile_context>
chip_gen: v7x
topology: tpu7x:2x2x1
jax: 0.10.0
libtpu: 0.0.40
codegen_flags: <defaults>
</compile_context>

<pallas_src>
import jax
import jax.numpy as jnp
from jax.experimental import pallas as pl
from jax.experimental.pallas import tpu as pltpu


def _sfs_kernel(x_ref, m_ref, o_ref):
    # m_ref is either (1, tn) (broadcast over sublanes) or (tb, 1) (broadcast
    # over lanes); both are a plain VPU multiply with jnp broadcasting.
    o_ref[...] = x_ref[...] * m_ref[...]


def _round_up(v, m):
    return ((v + m - 1) // m) * m


def sfs_forward(x, mask, *, target_block_bytes=8 * 1024 * 1024, donate_x=False):
    """Forward pass of sfs: x * mask.  x: (B, F, E), mask: (F, 1).

    NOTE: mask is cast to x.dtype (numeric divergence vs PyTorch type
    promotion when x is bf16/fp16 and the mask Parameter is fp32).
    """
    B, F, E = x.shape
    dtype = x.dtype
    itemsize = jnp.dtype(dtype).itemsize

    # dtype-aware sublane multiple (f32 -> 8, bf16/f16 -> 16, int8/fp8 -> 32)
    sub = {4: 8, 2: 16, 1: 32}.get(itemsize, 8)

    pad = 0
    if E % 128 == 0:
        # Lane-dense without padding: (B*F, E) rows with a per-row scalar mask.
        rows, cols = B * F, E
        x2 = x.reshape(rows, cols)
        m2 = jnp.tile(mask.astype(dtype), (B, 1))  # (B*F, 1), tiny
        per_row_mask = True
    else:
        # Flatten to (B, F*E) and pad the lane dim up to a multiple of 128.
        rows, cols_raw = B, F * E
        cols = _round_up(cols_raw, 128)
        pad = cols - cols_raw
        x2 = x.reshape(rows, cols_raw)
        m2 = jnp.broadcast_to(mask.astype(dtype), (F, E)).reshape(1, cols_raw)
        if pad:
            x2 = jnp.pad(x2, ((0, 0), (0, pad)))
            m2 = jnp.pad(m2, ((0, 0), (0, pad)))
        per_row_mask = False

    # ---- tiling --------------------------------------------------------
    # Lane tile: multiple of 128, capped so even a (sub, tn) slab is <= target.
    max_lanes = max(128, ((target_block_bytes // max(1, sub * itemsize)) // 128) * 128)
    tn = min(cols, max_lanes)

    # Row tile: fill the block budget, keep it a multiple of `sub` (or == rows).
    tb = max(1, target_block_bytes // max(1, tn * itemsize))
    if tb >= rows:
        tb = rows
    else:
        tb = max(sub, (tb // sub) * sub)

    # v7x has 2 TensorCores: avoid a single-step grid when we can split an axis.
    if pl.cdiv(rows, tb) * pl.cdiv(cols, tn) < 2:
        if cols >= 256:
            tn = _round_up(pl.cdiv(cols, 2), 128)
        elif rows >= 2 * sub:
            tb = _round_up(pl.cdiv(rows, 2), sub)

    grid = (pl.cdiv(rows, tb), pl.cdiv(cols, tn))

    # ---- specs ---------------------------------------------------------
    x_spec = pl.BlockSpec((tb, tn), lambda i, j: (i, j))
    o_spec = pl.BlockSpec((tb, tn), lambda i, j: (i, j))
    if per_row_mask:
        m_spec = pl.BlockSpec((tb, 1), lambda i, j: (i, 0))
        mask_bytes = rows * itemsize
        mask_blk_bytes = 2 * max(tb, sub) * 128 * itemsize  # conservative padded estimate
    else:
        m_spec = pl.BlockSpec((1, tn), lambda i, j: (0, j))
        mask_bytes = cols * itemsize
        mask_blk_bytes = 2 * 8 * tn * itemsize

    # VMEM budget: double-buffered x block + double-buffered out block + mask + headroom.
    blk = tb * tn * itemsize
    vmem_limit = int(min(max(4 * blk + mask_blk_bytes + (4 << 20), 32 << 20), 60 << 20))

    cost = pl.CostEstimate(
        flops=rows * cols,
        transcendentals=0,
        bytes_accessed=2 * rows * cols * itemsize + mask_bytes,
    )

    call_kwargs = {}
    if donate_x:
        call_kwargs["input_output_aliases"] = {0: 0}

    out2 = pl.pallas_call(
        _sfs_kernel,
        out_shape=jax.ShapeDtypeStruct((rows, cols), dtype),
        grid_spec=pltpu.PrefetchScalarGridSpec(
            num_scalar_prefetch=0,
            grid=grid,
            in_specs=[x_spec, m_spec],
            out_specs=o_spec,
        ),
        compiler_params=pltpu.CompilerParams(
            dimension_semantics=("parallel", "parallel"),
            vmem_limit_bytes=vmem_limit,
        ),
        cost_estimate=cost,
        **call_kwargs,
    )(x2, m2)

    if per_row_mask:
        return out2.reshape(B, F, E)
    if pad:
        out2 = out2[:, : F * E]
    return out2.reshape(B, F, E)


if __name__ == "__main__":
    key = jax.random.PRNGKey(0)
    kx, km, kx2, kx3 = jax.random.split(key, 4)

    # --- case 1: module-like small shapes (padded FE path, FE=64 -> 128) ---
    B, F, E = 2, 4, 16
    x = jax.random.normal(kx, (B, F, E), dtype=jnp.float32)

    mask_ones = jnp.ones((F, 1), dtype=jnp.float32)       # module init
    out = jax.block_until_ready(sfs_forward(x, mask_ones))
    ref = x * mask_ones[None, :, :]
    assert out.shape == (B, F, E)
    assert jnp.allclose(out, ref), "mismatch vs reference (ones mask)"

    mask_rand = jax.random.uniform(km, (F, 1), dtype=jnp.float32)
    out2 = jax.block_until_ready(sfs_forward(x, mask_rand))
    ref2 = x * mask_rand[None, :, :]
    assert jnp.allclose(out2, ref2, rtol=1e-6, atol=1e-6), "mismatch (random mask)"

    # --- case 2: E % 128 == 0 -> per-row-mask path (no padding), bf16 ---
    B2, F2, E2 = 2, 3, 128
    xb = jax.random.normal(kx2, (B2, F2, E2), dtype=jnp.bfloat16)
    mb = jax.random.uniform(km, (F2, 1), dtype=jnp.float32)
    outb = jax.block_until_ready(sfs_forward(xb, mb))
    refb = (xb * mb.astype(jnp.bfloat16)[None, :, :]).astype(jnp.bfloat16)
    assert outb.dtype == jnp.bfloat16 and outb.shape == (B2, F2, E2)
    assert jnp.allclose(outb.astype(jnp.float32), refb.astype(jnp.float32),
                        rtol=2e-2, atol=2e-2), "mismatch (bf16 per-row path)"

    # --- case 3: FE multiple of 128 -> lane-tiled slab path, 2 grid steps ---
    B3, F3, E3 = 8, 8, 32
    xc = jax.random.normal(kx3, (B3, F3, E3), dtype=jnp.float32)
    mc = jax.random.uniform(km, (F3, 1), dtype=jnp.float32)
    outc = jax.block_until_ready(sfs_forward(xc, mc))
    refc = xc * mc[None, :, :]
    assert jnp.allclose(outc, refc, rtol=1e-6, atol=1e-6), "mismatch (FE-tiled path)"

    print("KERNEL_OK")
</pallas_src>

<mosaic_0001>
module attributes {stable_mosaic.version = 11 : i64} {
  func.func @_sfs_kernel(%arg0: i32, %arg1: i32, %arg2: memref<2x128xf32, #tpu.memory_space<vmem>>, %arg3: memref<1x128xf32, #tpu.memory_space<vmem>>, %arg4: memref<2x128xf32, #tpu.memory_space<vmem>>) attributes {dimension_semantics = [#tpu.dimension_semantics<parallel>, #tpu.dimension_semantics<parallel>], iteration_bounds = array<i64: 1, 1>, scalar_prefetch = 0 : i64, scratch_operands = 0 : i64, tpu.core_type = #tpu.core_type<tc>, window_params = [{transform_indices = @transform_0, window_bounds = array<i64: 2, 128>}, {transform_indices = @transform_1, window_bounds = array<i64: 1, 128>}, {transform_indices = @transform_2, window_bounds = array<i64: 2, 128>}]} {
    %c0 = arith.constant 0 : index
    %c0_0 = arith.constant 0 : index
    %0 = vector.load %arg2[%c0, %c0_0] : memref<2x128xf32, #tpu.memory_space<vmem>>, vector<2x128xf32>
    %c0_1 = arith.constant 0 : index
    %c0_2 = arith.constant 0 : index
    %1 = vector.load %arg3[%c0_1, %c0_2] : memref<1x128xf32, #tpu.memory_space<vmem>>, vector<1x128xf32>
    %2 = vector.broadcast %1 : vector<1x128xf32> to vector<2x128xf32>
    %3 = arith.mulf %0, %2 : vector<2x128xf32>
    %c0_3 = arith.constant 0 : index
    %c0_4 = arith.constant 0 : index
    %4 = vector.load %arg4[%c0_3, %c0_4] : memref<2x128xf32, #tpu.memory_space<vmem>>, vector<2x128xf32>
    tpu.vector_store %arg4[%c0_3, %c0_4], %3 {strides = array<i32>} : memref<2x128xf32, #tpu.memory_space<vmem>>, vector<2x128xf32>,
    return
  }
  func.func @transform_0(%arg0: i32, %arg1: i32) -> (i32, i32) {
    %c0_i32 = arith.constant 0 : i32
    return %arg0, %arg1 : i32, i32
  }
  func.func @transform_1(%arg0: i32, %arg1: i32) -> (i32, i32) {
    %c0_i32 = arith.constant 0 : i32
    %c0_i32_0 = arith.constant 0 : i32
    return %c0_i32, %arg1 : i32, i32
  }
  func.func @transform_2(%arg0: i32, %arg1: i32) -> (i32, i32) {
    %c0_i32 = arith.constant 0 : i32
    return %arg0, %arg1 : i32, i32
  }
}

</mosaic_0001>

<llo_original>
// kernel: tpu_custom_call.1
$region0: #{tpu_custom_call.1}
  #allocation0 [shape = 'u32[]', space=smem, size = 0x4, offset = 0x4, fixed_abs, tag = 'smem constant byte address 0x4 - core index']
  #allocation1 [shape = 'u32[144,128]{1,0:T(1,128)}', space=vmem, size = 0x12000, scoped, tag = 'internal scratch']
  %s0 = inlined_call_operand.hbm [shape: f32[2,128], index: 0, kind: input, shape index: {}]
  %s1 = inlined_call_operand.vmem [shape: f32[1,128], index: 1, kind: input, shape index: {}]
  %s2 = inlined_call_operand.hbm [shape: f32[2,128], index: 2, kind: output, shape index: {}]
  %s3 = sld [smem:[#allocation0]]
  $region22: #{tpu_custom_call.1} parent=0
    _
  %s5 = ssub.s32 1, %s3
  %s6 = scalar_select 0, %s5, %s3
  $region1: #{tpu_custom_call.1} parent=0
    #allocation2 [shape = 'u8[1024]{0}', space=vmem, size = 0x400, scoped, tag = 'input window, operand 0, single buffered']
    #allocation3 [shape = 's32[1]{0}', space=sflag, size = 0x4, scoped, tag = 'scoped memory for tpu_custom_call.1']
    #allocation4 [shape = 's32[1]{0}', space=sflag, size = 0x4, scoped, tag = 'scoped memory for tpu_custom_call.1']
    #allocation5 [shape = 'u8[1024]{0}', space=vmem, size = 0x400, scoped, tag = 'output window, operand 0, single buffered']
    %7 = vsyncpa [#allocation3], 0
    %8 = vsyncpa [#allocation4], 0
    // Predicated region
    $region2: #{tpu_custom_call.1} parent=1 // pred_check
      _
    $region3: #{tpu_custom_call.1} parent=1 // pred_check_branch
      %10 = sbr.rel (0) target = $region5
    $region4: #{tpu_custom_call.1} parent=1 // pred_region
      %s12 = ssub.s32 32, 32
      %13 = vsyncadd [#allocation3], %s12
      %s15 = sshll.u32 [#allocation2], 4
      %s16 = int_to_ptr.vmem [resolvable:$true] %s15
      %18 = dma.hbm_to_vmem [thread:$0]  %s0, 32, %s16, [#allocation3]
    $region5: #{tpu_custom_call.1} parent=1 // pred_fallthru
      _
    // Predicated region
    $region6: #{tpu_custom_call.1} parent=1 // pred_check
      _
    $region7: #{tpu_custom_call.1} parent=1 // pred_check_branch
      %20 = sbr.rel (0) target = $region9
    $region8: #{tpu_custom_call.1} parent=1 // pred_region
      _
    $region9: #{tpu_custom_call.1} parent=1 // pred_fallthru
      _
    // Predicated region
    $region10: #{tpu_custom_call.1} parent=1 // pred_check
      _
    $region11: #{tpu_custom_call.1} parent=1 // pred_check_branch
      %22 = sbr.rel (0) target = $region13
    $region12: #{tpu_custom_call.1} parent=1 // pred_region
      %23 = dma.done [#allocation3], 32
    $region13: #{tpu_custom_call.1} parent=1 // pred_fallthru
      _
    %v24 = vld [vmem:[#allocation2] sm:$0x3]
    %v25 = vld [vmem:[%s1] sm:$0x1]
    %v27 = vlaneseq
    %v28 = vshrl.u32 %v27, 7
    %v29 = vsub.s32 0, %v28
    %v30 = vrot.slane %v25, %v29
    %v32 = vmul.f32 %v24, %v30
    %33 = vst [vmem:[#allocation5] sm:$0x3] %v32
    // Predicated region
    $region14: #{tpu_custom_call.1} parent=1 // pred_check
      _
    $region15: #{tpu_custom_call.1} parent=1 // pred_check_branch
      %35 = sbr.rel (0) target = $region17
    $region16: #{tpu_custom_call.1} parent=1 // pred_region
      %s37 = ssub.s32 32, 32
      %38 = vsyncadd [#allocation4], %s37
      %s40 = sshll.u32 [#allocation5], 4
      %s41 = int_to_ptr.vmem [resolvable:$true] %s40
      %43 = dma.vmem_to_hbm [thread:$0]  %s41, 32, %s2, [#allocation4]
    $region17: #{tpu_custom_call.1} parent=1 // pred_fallthru
      _
    // Predicated region
    $region18: #{tpu_custom_call.1} parent=1 // pred_check
      _
    $region19: #{tpu_custom_call.1} parent=1 // pred_check_branch
      %45 = sbr.rel (0) target = $region21
    $region20: #{tpu_custom_call.1} parent=1 // pred_region
      %46 = dma.done [#allocation4], 32
    $region21: #{tpu_custom_call.1} parent=1 // pred_fallthru
      _
    %47 = vsyncpa [#allocation3], 1
    %48 = vsyncpa [#allocation4], 1

</llo_original>
